<compile_context>
chip_gen: v7x
topology: tpu7x:2x2x1
jax: 0.10.0
libtpu: 0.0.40
codegen_flags: <defaults>
</compile_context>

<pallas_src>
import jax
import jax.numpy as jnp
from jax.experimental import pallas as pl
from jax.experimental.pallas import tpu as pltpu


def _round_up(x, m):
    return ((x + m - 1) // m) * m


def _lora_qkv_kernel(x_ref, wqkv_ref, bqkv_ref, wa_qv_ref, wb_blk_ref, o_ref):
    # x_ref:      (TM, D)      input dtype (cast to compute dtype below)
    # wqkv_ref:   (D, 3D)      compute dtype (bf16)
    # bqkv_ref:   (1, 3D)      f32
    # wa_qv_ref:  (D, 2r)      compute dtype  [Wa_q^T | Wa_v^T] fused
    # wb_blk_ref: (2r, 2D)     compute dtype  block-diag(Wb_q^T*s, Wb_v^T*s)
    # o_ref:      (TM, 3D)     output dtype
    D = wqkv_ref.shape[0]
    cd = wqkv_ref.dtype

    x = x_ref[...].astype(cd)  # cast hidden under MXU work

    # Fused LoRA-A projection: one MXU pass yields both rank-r activations.
    a_qv = jnp.dot(x, wa_qv_ref[...], preferred_element_type=jnp.float32)   # (TM, 2r)
    # Fused LoRA-B projection (block-diagonal): lora[:, :D] = q_lora*s,
    # lora[:, D:] = v_lora*s.  Avoids lane-slicing the narrow (TM, 2r) array.
    lora = jnp.dot(a_qv.astype(cd), wb_blk_ref[...],
                   preferred_element_type=jnp.float32)                      # (TM, 2D)

    # Fused qkv projection, slab-by-slab (no (TM, 3D) f32 intermediate).
    q = jnp.dot(x, wqkv_ref[:, 0:D], preferred_element_type=jnp.float32)
    o_ref[:, 0:D] = (q + bqkv_ref[:, 0:D] + lora[:, 0:D]).astype(o_ref.dtype)

    k = jnp.dot(x, wqkv_ref[:, D:2 * D], preferred_element_type=jnp.float32)
    o_ref[:, D:2 * D] = (k + bqkv_ref[:, D:2 * D]).astype(o_ref.dtype)

    v = jnp.dot(x, wqkv_ref[:, 2 * D:3 * D], preferred_element_type=jnp.float32)
    o_ref[:, 2 * D:3 * D] = (v + bqkv_ref[:, 2 * D:3 * D] + lora[:, D:2 * D]).astype(o_ref.dtype)


def lora_qkv(x, wqkv_t, bqkv, waq_t, wbq_t, wav_t, wbv_t, scaling=1.0,
             *, tm=512, compute_dtype=jnp.bfloat16):
    """x: (B, N, D). Weights pre-transposed: wqkv_t (D,3D), wa*_t (D,r), wb*_t (r,D)."""
    B, N, D = x.shape
    r = waq_t.shape[1]
    M = B * N
    cd = compute_dtype

    # ---- host-side weight prep (one-time, grid-invariant) ----------------
    wqkv_c = wqkv_t.astype(cd)                                        # (D, 3D)
    wa_qv = jnp.concatenate([waq_t, wav_t], axis=1).astype(cd)        # (D, 2r)
    zero = jnp.zeros((r, D), dtype=wbq_t.dtype)
    wb_blk = jnp.concatenate(                                         # (2r, 2D)
        [jnp.concatenate([wbq_t * scaling, zero], axis=1),
         jnp.concatenate([zero, wbv_t * scaling], axis=1)], axis=0).astype(cd)
    bqkv2 = bqkv.reshape(1, 3 * D).astype(jnp.float32)

    # ---- M tiling + padding ----------------------------------------------
    tm = max(8, _round_up(tm, 8))
    tm = min(tm, _round_up(M, 8))        # don't over-pad tiny problems
    M_pad = _round_up(M, tm)             # == pl.cdiv(M, tm) * tm
    x2 = x.reshape(M, D)
    if M_pad != M:
        x2 = jnp.pad(x2, ((0, M_pad - M), (0, 0)))

    grid = (M_pad // tm,)

    # ---- VMEM budget (double-buffered tiles + grid-invariant weights) ----
    xb = jnp.dtype(x.dtype).itemsize
    ob = jnp.dtype(x.dtype).itemsize
    cb = jnp.dtype(cd).itemsize
    est = (2 * tm * D * xb                                  # x tiles
           + 2 * tm * 3 * D * ob                            # out tiles
           + 2 * (D * 3 * D + D * 2 * r + 2 * r * 2 * D) * cb   # weights
           + 2 * 3 * D * 4)                                 # bias
    vmem_limit = int(min(max(est * 1.25 + (4 << 20), 32 << 20), 64 << 20))

    out2 = pl.pallas_call(
        _lora_qkv_kernel,
        out_shape=jax.ShapeDtypeStruct((M_pad, 3 * D), x.dtype),
        grid_spec=pltpu.PrefetchScalarGridSpec(
            num_scalar_prefetch=0,
            grid=grid,
            in_specs=[
                pl.BlockSpec((tm, D), lambda i: (i, 0)),        # x tile (pipelined over M)
                pl.BlockSpec((D, 3 * D), lambda i: (0, 0)),     # Wqkv^T        (grid-invariant)
                pl.BlockSpec((1, 3 * D), lambda i: (0, 0)),     # bias          (grid-invariant)
                pl.BlockSpec((D, 2 * r), lambda i: (0, 0)),     # [Wa_q^T|Wa_v^T]
                pl.BlockSpec((2 * r, 2 * D), lambda i: (0, 0)), # block-diag LoRA-B (scaled)
            ],
            out_specs=pl.BlockSpec((tm, 3 * D), lambda i: (i, 0)),
        ),
        compiler_params=pltpu.CompilerParams(
            dimension_semantics=("parallel",),          # megacore sharding over M tiles
            vmem_limit_bytes=vmem_limit,
        ),
    )(x2, wqkv_c, bqkv2, wa_qv, wb_blk)

    return out2[:M].reshape(B, N, 3 * D)


def lora_qkv_ref(x, wqkv_t, bqkv, waq_t, wbq_t, wav_t, wbv_t, scaling=1.0):
    """Pure-JAX f32 reference mirroring the PyTorch forward."""
    B, N, D = x.shape
    qkv = x @ wqkv_t + bqkv                      # (B, N, 3D)
    q_lora = (x @ waq_t) @ wbq_t * scaling       # (B, N, D)
    v_lora = (x @ wav_t) @ wbv_t * scaling       # (B, N, D)
    qkv = qkv.reshape(B, N, 3, D)
    qkv = qkv.at[:, :, 0, :].add(q_lora)
    qkv = qkv.at[:, :, 2, :].add(v_lora)
    return qkv.reshape(B, N, 3 * D)


if __name__ == "__main__":
    # Small shapes: batch=2, seq=10 (M=20, not a multiple of the test tile ->
    # exercises the cdiv/padding path), hidden=32, LoRA rank=8.
    B, N, D, r = 2, 10, 32, 8
    key = jax.random.PRNGKey(0)
    kx, kq, kb, ka1, kb1, ka2, kb2 = jax.random.split(key, 7)

    x = jax.random.normal(kx, (B, N, D), dtype=jnp.float32)

    # nn.Linear(D, 3D) with bias -> store W^T as (D, 3D)
    wqkv_t = jax.random.normal(kq, (D, 3 * D), dtype=jnp.float32) * 0.05
    bqkv = jax.random.normal(kb, (3 * D,), dtype=jnp.float32) * 0.05
    # LoRA A: nn.Linear(D, r, bias=False) -> (D, r); B: nn.Linear(r, D, bias=False) -> (r, D)
    waq_t = jax.random.normal(ka1, (D, r), dtype=jnp.float32) * 0.05
    wbq_t = jax.random.normal(kb1, (r, D), dtype=jnp.float32) * 0.05
    wav_t = jax.random.normal(ka2, (D, r), dtype=jnp.float32) * 0.05
    wbv_t = jax.random.normal(kb2, (r, D), dtype=jnp.float32) * 0.05

    # tm=8 so the tiny test runs a multi-step grid (grid=(3,)) with padding.
    out = lora_qkv(x, wqkv_t, bqkv, waq_t, wbq_t, wav_t, wbv_t, scaling=1.0, tm=8)
    out = jax.block_until_ready(out)

    ref = lora_qkv_ref(x, wqkv_t, bqkv, waq_t, wbq_t, wav_t, wbv_t, scaling=1.0)
    assert out.shape == (B, N, 3 * D)
    # bf16 MXU matmuls with f32 accumulation vs. f32 reference -> loosened tolerance.
    assert jnp.allclose(out, ref, atol=2e-2, rtol=2e-2), float(jnp.max(jnp.abs(out - ref)))

    print("KERNEL_OK")
</pallas_src>

<mosaic_0001>
module attributes {stable_mosaic.version = 11 : i64} {
  func.func @_lora_qkv_kernel(%arg0: i32, %arg1: memref<8x32xf32, #tpu.memory_space<vmem>>, %arg2: memref<32x96xbf16, #tpu.memory_space<vmem>>, %arg3: memref<1x96xf32, #tpu.memory_space<vmem>>, %arg4: memref<32x16xbf16, #tpu.memory_space<vmem>>, %arg5: memref<16x64xbf16, #tpu.memory_space<vmem>>, %arg6: memref<8x96xf32, #tpu.memory_space<vmem>>) attributes {dimension_semantics = [#tpu.dimension_semantics<parallel>], iteration_bounds = array<i64: 3>, scalar_prefetch = 0 : i64, scratch_operands = 0 : i64, tpu.core_type = #tpu.core_type<tc>, window_params = [{transform_indices = @transform_0, window_bounds = array<i64: 8, 32>}, {pipeline_mode = #tpu.pipeline_mode<synchronous>, transform_indices = @transform_1, window_bounds = array<i64: 32, 96>}, {pipeline_mode = #tpu.pipeline_mode<synchronous>, transform_indices = @transform_2, window_bounds = array<i64: 1, 96>}, {pipeline_mode = #tpu.pipeline_mode<synchronous>, transform_indices = @transform_3, window_bounds = array<i64: 32, 16>}, {pipeline_mode = #tpu.pipeline_mode<synchronous>, transform_indices = @transform_4, window_bounds = array<i64: 16, 64>}, {transform_indices = @transform_5, window_bounds = array<i64: 8, 96>}]} {
    %c0 = arith.constant 0 : index
    %c0_0 = arith.constant 0 : index
    %0 = vector.load %arg1[%c0, %c0_0] : memref<8x32xf32, #tpu.memory_space<vmem>>, vector<8x32xf32>
    %1 = arith.truncf %0 : vector<8x32xf32> to vector<8x32xbf16>
    %c0_1 = arith.constant 0 : index
    %c0_2 = arith.constant 0 : index
    %2 = vector.load %arg4[%c0_1, %c0_2] : memref<32x16xbf16, #tpu.memory_space<vmem>>, vector<32x16xbf16>
    %cst = arith.constant dense<0.000000e+00> : vector<8x16xf32>
    %3 = tpu.matmul %1, %2, %cst {dimension_numbers = #tpu.dot_dimension_numbers<[1], [0], [0], [1], [0, 0, 1, 1], [], []>} : vector<8x32xbf16>, vector<32x16xbf16>, vector<8x16xf32> -> vector<8x16xf32>
    %4 = arith.truncf %3 : vector<8x16xf32> to vector<8x16xbf16>
    %c0_3 = arith.constant 0 : index
    %c0_4 = arith.constant 0 : index
    %5 = vector.load %arg5[%c0_3, %c0_4] : memref<16x64xbf16, #tpu.memory_space<vmem>>, vector<16x64xbf16>
    %cst_5 = arith.constant dense<0.000000e+00> : vector<8x64xf32>
    %6 = tpu.matmul %4, %5, %cst_5 {dimension_numbers = #tpu.dot_dimension_numbers<[1], [0], [0], [1], [0, 0, 1, 1], [], []>} : vector<8x16xbf16>, vector<16x64xbf16>, vector<8x64xf32> -> vector<8x64xf32>
    %c0_6 = arith.constant 0 : index
    %c0_7 = arith.constant 0 : index
    %7 = vector.load %arg2[%c0_6, %c0_7] : memref<32x96xbf16, #tpu.memory_space<vmem>>, vector<32x32xbf16>
    %cst_8 = arith.constant dense<0.000000e+00> : vector<8x32xf32>
    %8 = tpu.matmul %1, %7, %cst_8 {dimension_numbers = #tpu.dot_dimension_numbers<[1], [0], [0], [1], [0, 0, 1, 1], [], []>} : vector<8x32xbf16>, vector<32x32xbf16>, vector<8x32xf32> -> vector<8x32xf32>
    %c0_9 = arith.constant 0 : index
    %c0_10 = arith.constant 0 : index
    %9 = vector.load %arg3[%c0_9, %c0_10] : memref<1x96xf32, #tpu.memory_space<vmem>>, vector<1x32xf32>
    %10 = vector.broadcast %9 : vector<1x32xf32> to vector<8x32xf32>
    %11 = arith.addf %8, %10 : vector<8x32xf32>
    %12 = vector.extract_strided_slice %6 {offsets = [0, 0], sizes = [8, 32], strides = [1, 1]} : vector<8x64xf32> to vector<8x32xf32>
    %13 = arith.addf %11, %12 : vector<8x32xf32>
    %c0_11 = arith.constant 0 : index
    %c0_12 = arith.constant 0 : index
    %14 = vector.load %arg6[%c0_11, %c0_12] : memref<8x96xf32, #tpu.memory_space<vmem>>, vector<8x32xf32>
    tpu.vector_store %arg6[%c0_11, %c0_12], %13 {strides = array<i32>} : memref<8x96xf32, #tpu.memory_space<vmem>>, vector<8x32xf32>,
    %c0_13 = arith.constant 0 : index
    %c32 = arith.constant 32 : index
    %15 = vector.load %arg2[%c0_13, %c32] : memref<32x96xbf16, #tpu.memory_space<vmem>>, vector<32x32xbf16>
    %cst_14 = arith.constant dense<0.000000e+00> : vector<8x32xf32>
    %16 = tpu.matmul %1, %15, %cst_14 {dimension_numbers = #tpu.dot_dimension_numbers<[1], [0], [0], [1], [0, 0, 1, 1], [], []>} : vector<8x32xbf16>, vector<32x32xbf16>, vector<8x32xf32> -> vector<8x32xf32>
    %c0_15 = arith.constant 0 : index
    %c32_16 = arith.constant 32 : index
    %17 = vector.load %arg3[%c0_15, %c32_16] : memref<1x96xf32, #tpu.memory_space<vmem>>, vector<1x32xf32>
    %18 = vector.broadcast %17 : vector<1x32xf32> to vector<8x32xf32>
    %19 = arith.addf %16, %18 : vector<8x32xf32>
    %c0_17 = arith.constant 0 : index
    %c32_18 = arith.constant 32 : index
    %20 = vector.load %arg6[%c0_17, %c32_18] : memref<8x96xf32, #tpu.memory_space<vmem>>, vector<8x32xf32>
    tpu.vector_store %arg6[%c0_17, %c32_18], %19 {strides = array<i32>} : memref<8x96xf32, #tpu.memory_space<vmem>>, vector<8x32xf32>,
    %c0_19 = arith.constant 0 : index
    %c64 = arith.constant 64 : index
    %21 = vector.load %arg2[%c0_19, %c64] : memref<32x96xbf16, #tpu.memory_space<vmem>>, vector<32x32xbf16>
    %cst_20 = arith.constant dense<0.000000e+00> : vector<8x32xf32>
    %22 = tpu.matmul %1, %21, %cst_20 {dimension_numbers = #tpu.dot_dimension_numbers<[1], [0], [0], [1], [0, 0, 1, 1], [], []>} : vector<8x32xbf16>, vector<32x32xbf16>, vector<8x32xf32> -> vector<8x32xf32>
    %c0_21 = arith.constant 0 : index
    %c64_22 = arith.constant 64 : index
    %23 = vector.load %arg3[%c0_21, %c64_22] : memref<1x96xf32, #tpu.memory_space<vmem>>, vector<1x32xf32>
    %24 = vector.broadcast %23 : vector<1x32xf32> to vector<8x32xf32>
    %25 = arith.addf %22, %24 : vector<8x32xf32>
    %26 = vector.extract_strided_slice %6 {offsets = [0, 32], sizes = [8, 32], strides = [1, 1]} : vector<8x64xf32> to vector<8x32xf32>
    %27 = arith.addf %25, %26 : vector<8x32xf32>
    %c0_23 = arith.constant 0 : index
    %c64_24 = arith.constant 64 : index
    %28 = vector.load %arg6[%c0_23, %c64_24] : memref<8x96xf32, #tpu.memory_space<vmem>>, vector<8x32xf32>
    tpu.vector_store %arg6[%c0_23, %c64_24], %27 {strides = array<i32>} : memref<8x96xf32, #tpu.memory_space<vmem>>, vector<8x32xf32>,
    return
  }
  func.func @transform_0(%arg0: i32) -> (i32, i32) {
    %c0_i32 = arith.constant 0 : i32
    %c0_i32_0 = arith.constant 0 : i32
    return %arg0, %c0_i32 : i32, i32
  }
  func.func @transform_1(%arg0: i32) -> (i32, i32) {
    %c0_i32 = arith.constant 0 : i32
    %c0_i32_0 = arith.constant 0 : i32
    %c0_i32_1 = arith.constant 0 : i32
    return %c0_i32, %c0_i32_0 : i32, i32
  }
  func.func @transform_2(%arg0: i32) -> (i32, i32) {
    %c0_i32 = arith.constant 0 : i32
    %c0_i32_0 = arith.constant 0 : i32
    %c0_i32_1 = arith.constant 0 : i32
    return %c0_i32, %c0_i32_0 : i32, i32
  }
  func.func @transform_3(%arg0: i32) -> (i32, i32) {
    %c0_i32 = arith.constant 0 : i32
    %c0_i32_0 = arith.constant 0 : i32
    %c0_i32_1 = arith.constant 0 : i32
    return %c0_i32, %c0_i32_0 : i32, i32
  }
  func.func @transform_4(%arg0: i32) -> (i32, i32) {
    %c0_i32 = arith.constant 0 : i32
    %c0_i32_0 = arith.constant 0 : i32
    %c0_i32_1 = arith.constant 0 : i32
    return %c0_i32, %c0_i32_0 : i32, i32
  }
  func.func @transform_5(%arg0: i32) -> (i32, i32) {
    %c0_i32 = arith.constant 0 : i32
    %c0_i32_0 = arith.constant 0 : i32
    return %arg0, %c0_i32 : i32, i32
  }
}

</mosaic_0001>

<llo_original>
// kernel: tpu_custom_call.1
$region0: #{tpu_custom_call.1}
  #allocation0 [shape = 'u32[]', space=smem, size = 0x4, offset = 0x4, fixed_abs, tag = 'smem constant byte address 0x4 - core index']
  #allocation1 [shape = 'u32[144,128]{1,0:T(1,128)}', space=vmem, size = 0x12000, scoped, tag = 'internal scratch']
  %s0 = inlined_call_operand.vmem [shape: f32[24,32], index: 0, kind: input, shape index: {}]
  %s1 = inlined_call_operand.hbm [shape: bf16[32,96], index: 1, kind: input, shape index: {}]
  %s2 = inlined_call_operand.vmem [shape: f32[1,96], index: 2, kind: input, shape index: {}]
  %s3 = inlined_call_operand.vmem [shape: bf16[32,16], index: 3, kind: input, shape index: {}]
  %s4 = inlined_call_operand.hbm [shape: bf16[16,64], index: 4, kind: input, shape index: {}]
  %s5 = inlined_call_operand.hbm [shape: f32[24,96], index: 5, kind: output, shape index: {}]
  %s6 = sld [smem:[#allocation0]]
  $region61: #{tpu_custom_call.1} parent=0
    _
  %s8 = ssub.s32 1, %s6
  %s9 = scalar_select 0, %s8, %s6
  $region1: #{tpu_custom_call.1} parent=0
    #allocation2 [shape = 'u8[8192]{0}', space=vmem, size = 0x2000, scoped, tag = 'input window, operand 1, single buffered']
    #allocation3 [shape = 's32[2]{0}', space=sflag, size = 0x8, scoped, tag = 'scoped memory for tpu_custom_call.1']
    #allocation4 [shape = 's32[2]{0}', space=sflag, size = 0x8, scoped, tag = 'scoped memory for tpu_custom_call.1']
    #allocation5 [shape = 'u8[4096]{0}', space=vmem, size = 0x1000, scoped, tag = 'input window, operand 4, single buffered']
    #allocation6 [shape = 's32[1]{0}', space=sflag, size = 0x4, scoped, tag = 'scoped memory for tpu_custom_call.1']
    #allocation7 [shape = 'u8[8192]{0}', space=vmem, size = 0x2000, scoped, tag = 'output window, operand 0']
    %10 = vsyncpa [#allocation3], 0
    %11 = vsyncpa [#allocation6], 0
    %12 = vsyncpa [#allocation4], 0
    %s13 = scalar_lea.sflag [#allocation4], 1
    %14 = vsyncpa %s13, 0
    loop: start=0, step=1, limit=5
    $region2: #{tpu_custom_call.1} parent=1 // loop_pre_header
      _
    $region3: #{tpu_custom_call.1} parent=1 // loop_header
      %s16 = sphi 0, %s20
      %p17 = scmp.ge.s32.totalorder %s16, 5
      %s26 = sphi 0, %s28
      %s29 = sphi 0, %s26
      %s30 = sphi 0, %s29
      %s46 = sphi 0, %s30
      %s50 = sphi 0, %s50
      %s52 = sphi 0, %s50
      %s53 = sphi 0, %s52
      %s67 = sphi 0, %s53
      %s71 = sphi 0, %s71
      %s73 = sphi 0, %s71
      %s74 = sphi 0, %s73
      %s88 = sphi 0, %s74
      %s92 = sphi 0, %s92
      %s94 = sphi 0, %s92
      %s95 = sphi 0, %s94
      %s109 = sphi 0, %s95
      %s113 = sphi 0, %s113
      %s115 = sphi 0, %s113
      %s116 = sphi 0, %s115
      %s130 = sphi 0, %s116
      %s136 = sphi 0, %s138
      %s139 = sphi 0, %s136
      %s140 = sphi 0, %s139
      %s156 = sphi 0, %s140
    $region4: #{tpu_custom_call.1} parent=1 // loop_header_branch
      %19 = sbr.rel (%p17) target = $region8
    $region5: #{tpu_custom_call.1} parent=1 // loop_body
      %s21 = ssub.s32 %s16, 1
      %s22 = ssub.s32 %s16, 2
      %s23 = sadd.s32 %s16, 1
      %s24 = ssub.s32 %s16, %s23
      %p25 = scmp.eq.s32.totalorder %s24, 0
      %s27 = sadd.s32 %s26, 1
      %s28 = scalar_select %p25, %s26, %s27
      %p31 = pneg %p25
      %p32 = scmp.eq.s32.totalorder %s16, 2
      %p33 = por %p31, %p32
      %p34 = scmp.ne.s32.totalorder %s26, %s29
      %p35 = scmp.eq.s32.totalorder %s16, 0
      %p36 = por %p34, %p35
      %p37 = scmp.ne.s32.totalorder %s26, %s29
      %p38 = scmp.eq.s32.totalorder %s21, 2
      %p39 = por %p37, %p38
      %p40 = scmp.ne.s32.totalorder %s29, %s30
      %p41 = scmp.eq.s32.totalorder %s21, 0
      %p42 = por %p40, %p41
      %p43 = scmp.ne.s32.totalorder %s29, %s30
      %p44 = scmp.eq.s32.totalorder %s22, 2
      %p45 = por %p43, %p44
      %p47 = scmp.ne.s32.totalorder %s30, %s46
      %p48 = scmp.eq.s32.totalorder %s22, 0
      %p49 = por %p47, %p48
      %s51 = sadd.s32 %s50, 1
      %p54 = scmp.eq.s32.totalorder %s16, 2
      %p55 = scmp.ne.s32.totalorder %s50, %s52
      %p56 = scmp.eq.s32.totalorder %s16, 0
      %p57 = por %p55, %p56
      %p58 = scmp.ne.s32.totalorder %s50, %s52
      %p59 = scmp.eq.s32.totalorder %s21, 2
      %p60 = por %p58, %p59
      %p61 = scmp.ne.s32.totalorder %s52, %s53
      %p62 = scmp.eq.s32.totalorder %s21, 0
      %p63 = por %p61, %p62
      %p64 = scmp.ne.s32.totalorder %s52, %s53
      %p65 = scmp.eq.s32.totalorder %s22, 2
      %p66 = por %p64, %p65
      %p68 = scmp.ne.s32.totalorder %s53, %s67
      %p69 = scmp.eq.s32.totalorder %s22, 0
      %p70 = por %p68, %p69
      %s72 = sadd.s32 %s71, 1
      %p75 = scmp.eq.s32.totalorder %s16, 2
      %p76 = scmp.ne.s32.totalorder %s71, %s73
      %p77 = scmp.eq.s32.totalorder %s16, 0
      %p78 = por %p76, %p77
      %p79 = scmp.ne.s32.totalorder %s71, %s73
      %p80 = scmp.eq.s32.totalorder %s21, 2
      %p81 = por %p79, %p80
      %p82 = scmp.ne.s32.totalorder %s73, %s74
      %p83 = scmp.eq.s32.totalorder %s21, 0
      %p84 = por %p82, %p83
      %p85 = scmp.ne.s32.totalorder %s73, %s74
      %p86 = scmp.eq.s32.totalorder %s22, 2
      %p87 = por %p85, %p86
      %p89 = scmp.ne.s32.totalorder %s74, %s88
      %p90 = scmp.eq.s32.totalorder %s22, 0
      %p91 = por %p89, %p90
      %s93 = sadd.s32 %s92, 1
      %p96 = scmp.eq.s32.totalorder %s16, 2
      %p97 = scmp.ne.s32.totalorder %s92, %s94
      %p98 = scmp.eq.s32.totalorder %s16, 0
      %p99 = por %p97, %p98
      %p100 = scmp.ne.s32.totalorder %s92, %s94
      %p101 = scmp.eq.s32.totalorder %s21, 2
      %p102 = por %p100, %p101
      %p103 = scmp.ne.s32.totalorder %s94, %s95
      %p104 = scmp.eq.s32.totalorder %s21, 0
      %p105 = por %p103, %p104
      %p106 = scmp.ne.s32.totalorder %s94, %s95
      %p107 = scmp.eq.s32.totalorder %s22, 2
      %p108 = por %p106, %p107
      %p110 = scmp.ne.s32.totalorder %s95, %s109
      %p111 = scmp.eq.s32.totalorder %s22, 0
      %p112 = por %p110, %p111
      %s114 = sadd.s32 %s113, 1
      %p117 = scmp.eq.s32.totalorder %s16, 2
      %p118 = scmp.ne.s32.totalorder %s113, %s115
      %p119 = scmp.eq.s32.totalorder %s16, 0
      %p120 = por %p118, %p119
      %p121 = scmp.ne.s32.totalorder %s113, %s115
      %p122 = scmp.eq.s32.totalorder %s21, 2
      %p123 = por %p121, %p122
      %p124 = scmp.ne.s32.totalorder %s115, %s116
      %p125 = scmp.eq.s32.totalorder %s21, 0
      %p126 = por %p124, %p125
      %p127 = scmp.ne.s32.totalorder %s115, %s116
      %p128 = scmp.eq.s32.totalorder %s22, 2
      %p129 = por %p127, %p128
      %p131 = scmp.ne.s32.totalorder %s116, %s130
      %p132 = scmp.eq.s32.totalorder %s22, 0
      %p133 = por %p131, %p132
      %s134 = ssub.s32 %s16, %s23
      %p135 = scmp.eq.s32.totalorder %s134, 0
      %s137 = sadd.s32 %s136, 1
      %s138 = scalar_select %p135, %s136, %s137
      %p141 = pneg %p135
      %p142 = scmp.eq.s32.totalorder %s16, 2
      %p143 = por %p141, %p142
      %p144 = scmp.ne.s32.totalorder %s136, %s139
      %p145 = scmp.eq.s32.totalorder %s16, 0
      %p146 = por %p144, %p145
      %p147 = scmp.ne.s32.totalorder %s136, %s139
      %p148 = scmp.eq.s32.totalorder %s21, 2
      %p149 = por %p147, %p148
      %p150 = scmp.ne.s32.totalorder %s139, %s140
      %p151 = scmp.eq.s32.totalorder %s21, 0
      %p152 = por %p150, %p151
      %p153 = scmp.ne.s32.totalorder %s139, %s140
      %p154 = scmp.eq.s32.totalorder %s22, 2
      %p155 = por %p153, %p154
      %p157 = scmp.ne.s32.totalorder %s140, %s156
      %p158 = scmp.eq.s32.totalorder %s22, 0
      %p159 = por %p157, %p158
      %p160 = scmp.le.s32.totalorder 1, %s16
      %p161 = scmp.lt.s32.totalorder %s16, 4
      %p162 = pnand %p160, %p161
      %p163 = pneg %p162
      // Predicated region
      $region9: #{tpu_custom_call.1} parent=5 // pred_check
        _
      $region10: #{tpu_custom_call.1} parent=5 // pred_check_branch
        %165 = sbr.rel (%p162) target = $region12
      $region11: #{tpu_custom_call.1} parent=5 // pred_region
        %s166 = ssub.s32 %s16, 1
        // Predicated region
        $region13: #{tpu_custom_call.1} parent=11 // pred_check
          %p167 = pneg %p63
        $region14: #{tpu_custom_call.1} parent=11 // pred_check_branch
          %169 = sbr.rel (%p167) target = $region16
        $region15: #{tpu_custom_call.1} parent=11 // pred_region
          %s171 = ssub.s32 256, 256
          %172 = vsyncadd [#allocation3], %s171
          %s173 = sshll.u32 [#allocation2], 4
          %s174 = int_to_ptr.vmem [resolvable:$true] %s173
          %179 = dma.hbm_to_vmem [thread:$0]  %s1, 256, %s174, [#allocation3], 64, 64, 4
        $region16: #{tpu_custom_call.1} parent=11 // pred_fallthru
          _
        // Predicated region
        $region17: #{tpu_custom_call.1} parent=11 // pred_check
          %p180 = pneg %p84
        $region18: #{tpu_custom_call.1} parent=11 // pred_check_branch
          %182 = sbr.rel (%p180) target = $region20
        $region19: #{tpu_custom_call.1} parent=11 // pred_region
          _
        $region20: #{tpu_custom_call.1} parent=11 // pred_fallthru
          _
        // Predicated region
        $region21: #{tpu_custom_call.1} parent=11 // pred_check
          %p183 = pneg %p105
        $region22: #{tpu_custom_call.1} parent=11 // pred_check_branch
          %185 = sbr.rel (%p183) target = $region24
        $region23: #{tpu_custom_call.1} parent=11 // pred_region
          _
        $region24: #{tpu_custom_call.1} parent=11 // pred_fallthru
          _
        // Predicated region
        $region25: #{tpu_custom_call.1} parent=11 // pred_check
          %p186 = pneg %p126
        $region26: #{tpu_custom_call.1} parent=11 // pred_check_branch
          %188 = sbr.rel (%p186) target = $region28
        $region27: #{tpu_custom_call.1} parent=11 // pred_region
          %s190 = ssub.s32 128, 128
          %191 = vsyncadd [#allocation6], %s190
          %s192 = sshll.u32 [#allocation5], 4
          %s193 = int_to_ptr.vmem [resolvable:$true] %s192
          %198 = dma.hbm_to_vmem [thread:$0]  %s4, 128, %s193, [#allocation6], 64, 64, 4
        $region28: #{tpu_custom_call.1} parent=11 // pred_fallthru
          _
      $region12: #{tpu_custom_call.1} parent=5 // pred_fallthru
        _
      %p199 = scmp.lt.s32.totalorder %s16, 3
      // Predicated region
      $region29: #{tpu_custom_call.1} parent=5 // pred_check
        %p200 = pneg %p199
      $region30: #{tpu_custom_call.1} parent=5 // pred_check_branch
        %202 = sbr.rel (%p200) target = $region32
      $region31: #{tpu_custom_call.1} parent=5 // pred_region
        // Predicated region
        $region33: #{tpu_custom_call.1} parent=31 // pred_check
          %p203 = pneg %p36
        $region34: #{tpu_custom_call.1} parent=31 // pred_check_branch
          %205 = sbr.rel (%p203) target = $region36
        $region35: #{tpu_custom_call.1} parent=31 // pred_region
          %p206 = scmp.lt.s32.totalorder %s16, 2
          %s207 = scalar_select %p206, %s16, 2
          %s208 = smul.addr %s207, 8
          %s209 = scalar_lea.vmem %s0, %s208
        $region36: #{tpu_custom_call.1} parent=31 // pred_fallthru
          _
      $region32: #{tpu_custom_call.1} parent=5 // pred_fallthru
        _
      %p210 = scmp.le.s32.totalorder 1, %s16
      %p211 = scmp.lt.s32.totalorder %s16, 4
      %p212 = pnand %p210, %p211
      %p213 = pneg %p212
      // Predicated region
      $region37: #{tpu_custom_call.1} parent=5 // pred_check
        _
      $region38: #{tpu_custom_call.1} parent=5 // pred_check_branch
        %215 = sbr.rel (%p212) target = $region40
      $region39: #{tpu_custom_call.1} parent=5 // pred_region
        %s216 = ssub.s32 %s16, 1
        // Predicated region
        $region41: #{tpu_custom_call.1} parent=39 // pred_check
          %p217 = pneg %p63
        $region42: #{tpu_custom_call.1} parent=39 // pred_check_branch
          %219 = sbr.rel (%p217) target = $region44
        $region43: #{tpu_custom_call.1} parent=39 // pred_region
          %220 = dma.done [#allocation3], 256
        $region44: #{tpu_custom_call.1} parent=39 // pred_fallthru
          _
        // Predicated region
        $region45: #{tpu_custom_call.1} parent=39 // pred_check
          %p221 = pneg %p126
        $region46: #{tpu_custom_call.1} parent=39 // pred_check_branch
          %223 = sbr.rel (%p221) target = $region48
        $region47: #{tpu_custom_call.1} parent=39 // pred_region
          %224 = dma.done [#allocation6], 128
        $region48: #{tpu_custom_call.1} parent=39 // pred_fallthru
          _
        %p225 = scmp.lt.s32.totalorder %s21, 2
        %s226 = scalar_select %p225, %s21, 2
        %s227 = smul.addr %s226, 8
        %s228 = scalar_lea.vmem %s0, %s227
        %p229 = pneg %p42
        %p230 = pneg %p39
        %p231 = pneg %p63
        %p232 = pneg %p60
        %p233 = pneg %p84
        %p234 = pneg %p81
        %p235 = pneg %p105
        %p236 = pneg %p102
        %p237 = pneg %p126
        %p238 = pneg %p123
        %p239 = pneg %p152
        %p240 = pneg %p149
        %s241 = sand.u32 %s139, 1
        %s242 = scalar_lea.sflag [#allocation4], %s241
        %s243 = sand.u32 %s139, 1
        %s244 = smul.addr %s243, 8
        %s245 = scalar_lea.vmem [#allocation7], %s244
        %p246 = scmp.lt.s32.totalorder %s21, 2
        %s247 = scalar_select %p246, %s21, 2
        %s248 = smul.addr %s247, 8
        %s249 = scalar_lea.vmem %s0, %s248
        %v251 = vld [vmem:[%s249] sm:$0xff]
        %v252 = vpack.c.bf16 %v251, %v251
        %v253 = vld [vmem:[%s3] sm:$0xf]
        %v254 = vld [vmem:[%s3 + $0x4] sm:$0xf]
        %v255 = vld [vmem:[%s3 + $0x8] sm:$0xf]
        %v256 = vld [vmem:[%s3 + $0xc] sm:$0xf]
        %v261 = vunpack.c.l.b16 %v253
        %v262 = vunpack.c.l.b16 %v254
        %v263 = vunpack.c.l.b16 %v255
        %v264 = vunpack.c.l.b16 %v256
        %v265 = vpack.c.b16 %v262, %v261
        %v266 = vpack.c.b16 %v264, %v263
        %vm269 = vcmask 261120
        %v271 = vsel %vm269, %v252, 0
        %273 = vmatprep.subr.bf16.mxu0 0
        %274 = vmatpush1.bf16.msra.mxu0 %v265
        %275 = vmatprep.subr.bf16.mxu0 0
        %276 = vmatpush1.bf16.msra.mxu0 %v266
        %277 = vmatprep.subr.bf16.mxu0 0
        %278 = vmatpush1.bf16.msra.mxu0 0
        %279 = vmatprep.subr.bf16.mxu0 0
        %280 = vmatpush1.bf16.msra.mxu0 0
        %281 = vmatprep.subr.bf16.mxu0 0
        %282 = vmatpush1.bf16.msra.mxu0 0
        %283 = vmatprep.subr.bf16.mxu0 0
        %284 = vmatpush1.bf16.msra.mxu0 0
        %285 = vmatprep.subr.bf16.mxu0 0
        %286 = vmatpush1.bf16.msra.mxu0 0
        %287 = vmatprep.subr.bf16.mxu0 0
        %288 = vmatpush1.bf16.msra.mxu0 0
        %289 = vmatprep.subr.bf16.mxu0 0
        %290 = vmatpush1.bf16.msra.mxu0 0
        %291 = vmatprep.subr.bf16.mxu0 0
        %292 = vmatpush1.bf16.msra.mxu0 0
        %293 = vmatprep.subr.bf16.mxu0 0
        %294 = vmatpush1.bf16.msra.mxu0 0
        %295 = vmatprep.subr.bf16.mxu0 0
        %296 = vmatpush1.bf16.msra.mxu0 0
        %297 = vmatprep.subr.bf16.mxu0 0
        %298 = vmatpush1.bf16.msra.mxu0 0
        %299 = vmatprep.subr.bf16.mxu0 0
        %300 = vmatpush1.bf16.msra.mxu0 0
        %301 = vmatprep.subr.bf16.mxu0 0
        %302 = vmatpush1.bf16.msra.mxu0 0
        %303 = vmatprep.subr.bf16.mxu0 0
        %304 = vmatpush1.bf16.msra.mxu0 0
        %305 = vmatprep.mubr.bf16.mxu0 0
        %306 = vmatmul.mubr.bf16.gmra.mrb[0].mxu0 %v271
        %v307 = vpop.f32.mrb[0].mxu0
        %v308 = vadd.f32 0.0, %v307
        %v309 = vpop.f32.mrb[0].mxu0
        %v310 = vpop.f32.mrb[0].mxu0
        %v311 = vpop.f32.mrb[0].mxu0
        %312 = vdwg.mxu0
        %v313 = vpack.c.bf16 %v308, %v308
        %v314 = vld [vmem:[#allocation5] sm:$0xf]
        %v315 = vld [vmem:[#allocation5 + $0x4] sm:$0xf]
        %v318 = vunpack.c.l.b16 %v314
        %v319 = vunpack.c.l.b16 %v315
        %v320 = vpack.c.b16 %v319, %v318
        %vm322 = vcmask 130048
        %v324 = vsel %vm322, %v313, 0
        %326 = vmatprep.subr.bf16.mxu0 0
        %327 = vmatpush1.bf16.msra.mxu0 %v320
        %328 = vmatprep.subr.bf16.mxu0 0
        %329 = vmatpush1.bf16.msra.mxu0 0
        %330 = vmatprep.subr.bf16.mxu0 0
        %331 = vmatpush1.bf16.msra.mxu0 0
        %332 = vmatprep.subr.bf16.mxu0 0
        %333 = vmatpush1.bf16.msra.mxu0 0
        %334 = vmatprep.subr.bf16.mxu0 0
        %335 = vmatpush1.bf16.msra.mxu0 0
        %336 = vmatprep.subr.bf16.mxu0 0
        %337 = vmatpush1.bf16.msra.mxu0 0
        %338 = vmatprep.subr.bf16.mxu0 0
        %339 = vmatpush1.bf16.msra.mxu0 0
        %340 = vmatprep.subr.bf16.mxu0 0
        %341 = vmatpush1.bf16.msra.mxu0 0
        %342 = vmatprep.subr.bf16.mxu0 0
        %343 = vmatpush1.bf16.msra.mxu0 0
        %344 = vmatprep.subr.bf16.mxu0 0
        %345 = vmatpush1.bf16.msra.mxu0 0
        %346 = vmatprep.subr.bf16.mxu0 0
        %347 = vmatpush1.bf16.msra.mxu0 0
        %348 = vmatprep.subr.bf16.mxu0 0
        %349 = vmatpush1.bf16.msra.mxu0 0
        %350 = vmatprep.subr.bf16.mxu0 0
        %351 = vmatpush1.bf16.msra.mxu0 0
        %352 = vmatprep.subr.bf16.mxu0 0
        %353 = vmatpush1.bf16.msra.mxu0 0
        %354 = vmatprep.subr.bf16.mxu0 0
        %355 = vmatpush1.bf16.msra.mxu0 0
        %356 = vmatprep.subr.bf16.mxu0 0
        %357 = vmatpush1.bf16.msra.mxu0 0
        %358 = vmatprep.mubr.bf16.mxu0 0
        %359 = vmatmul.mubr.bf16.gmra.mrb[0].mxu0 %v324
        %v360 = vpop.f32.mrb[0].mxu0
        %v361 = vadd.f32 0.0, %v360
        %v362 = vpop.f32.mrb[0].mxu0
        %v363 = vpop.f32.mrb[0].mxu0
        %v364 = vpop.f32.mrb[0].mxu0
        %365 = vdwg.mxu0
        %v366 = vld [vmem:[#allocation2] sm:$0xf]
        %v367 = vld [vmem:[#allocation2 + $0x4] sm:$0xf]
        %v368 = vld [vmem:[#allocation2 + $0x8] sm:$0xf]
        %v369 = vld [vmem:[#allocation2 + $0xc] sm:$0xf]
        %v370 = vld [vmem:[%s2] sm:$0x1]
        %v372 = vlaneseq
        %v373 = vshrl.u32 %v372, 7
        %v374 = vsub.s32 0, %v373
        %v375 = vrot.slane %v370, %v374
        %v381 = vunpack.c.l.b16 %v366
        %v382 = vunpack.c.l.b16 %v367
        %v383 = vunpack.c.l.b16 %v368
        %v384 = vunpack.c.l.b16 %v369
        %v385 = vpack.c.b16 %v382, %v381
        %v386 = vpack.c.b16 %v384, %v383
        %389 = vmatprep.subr.bf16.mxu0 0
        %390 = vmatpush1.bf16.msra.mxu0 %v385
        %391 = vmatprep.subr.bf16.mxu0 0
        %392 = vmatpush1.bf16.msra.mxu0 %v386
        %393 = vmatprep.subr.bf16.mxu0 0
        %394 = vmatpush1.bf16.msra.mxu0 0
        %395 = vmatprep.subr.bf16.mxu0 0
        %396 = vmatpush1.bf16.msra.mxu0 0
        %397 = vmatprep.subr.bf16.mxu0 0
        %398 = vmatpush1.bf16.msra.mxu0 0
        %399 = vmatprep.subr.bf16.mxu0 0
        %400 = vmatpush1.bf16.msra.mxu0 0
        %401 = vmatprep.subr.bf16.mxu0 0
        %402 = vmatpush1.bf16.msra.mxu0 0
        %403 = vmatprep.subr.bf16.mxu0 0
        %404 = vmatpush1.bf16.msra.mxu0 0
        %405 = vmatprep.subr.bf16.mxu0 0
        %406 = vmatpush1.bf16.msra.mxu0 0
        %407 = vmatprep.subr.bf16.mxu0 0
        %408 = vmatpush1.bf16.msra.mxu0 0
        %409 = vmatprep.subr.bf16.mxu0 0
        %410 = vmatpush1.bf16.msra.mxu0 0
        %411 = vmatprep.subr.bf16.mxu0 0
        %412 = vmatpush1.bf16.msra.mxu0 0
        %413 = vmatprep.subr.bf16.mxu0 0
        %414 = vmatpush1.bf16.msra.mxu0 0
        %415 = vmatprep.subr.bf16.mxu0 0
        %416 = vmatpush1.bf16.msra.mxu0 0
        %417 = vmatprep.subr.bf16.mxu0 0
        %418 = vmatpush1.bf16.msra.mxu0 0
        %419 = vmatprep.subr.bf16.mxu0 0
        %420 = vmatpush1.bf16.msra.mxu0 0
        %421 = vmatprep.mubr.bf16.mxu0 0
        %422 = vmatmul.mubr.bf16.gmra.mrb[0].mxu0 %v271
        %v423 = vpop.f32.mrb[0].mxu0
        %v424 = vadd.f32 %v375, %v423
        %v425 = vpop.f32.mrb[0].mxu0
        %v426 = vpop.f32.mrb[0].mxu0
        %v427 = vpop.f32.mrb[0].mxu0
        %428 = vdwg.mxu0
        %v429 = vadd.f32 %v424, %v361
        %430 = vst.msk [vmem:[%s245] sm:$0xff] %vm269, %v429
        %v431 = vld [vmem:[#allocation2] sm:$0xf]
        %v432 = vld [vmem:[#allocation2 + $0x4] sm:$0xf]
        %v433 = vld [vmem:[#allocation2 + $0x8] sm:$0xf]
        %v434 = vld [vmem:[#allocation2 + $0xc] sm:$0xf]
        %v435 = vld [vmem:[%s2] sm:$0x1]
        %v437 = vlaneseq
        %v438 = vshrl.u32 %v437, 7
        %v439 = vsub.s32 0, %v438
        %v440 = vrot.slane %v435, %v439
        %v445 = vunpack.c.l.b16 %v431
        %v446 = vunpack.c.l.b16 %v432
        %v447 = vunpack.c.l.b16 %v433
        %v448 = vunpack.c.l.b16 %v434
        %v449 = vpack.c.b16 %v446, %v445
        %v450 = vpack.c.b16 %v448, %v447
        %451 = vrot.lane.b32.xlu0 %v449, 96
        %v452 = vpop.permute.xlu0 %451
        %453 = vrot.lane.b32.xlu0 %v450, 96
        %v454 = vpop.permute.xlu0 %453
        %457 = vrot.lane.b32.xlu0 %v440, 96
        %v458 = vpop.permute.xlu0 %457
        %460 = vmatprep.subr.bf16.mxu0 0
        %461 = vmatpush1.bf16.msra.mxu0 %v452
        %462 = vmatprep.subr.bf16.mxu0 0
        %463 = vmatpush1.bf16.msra.mxu0 %v454
        %464 = vmatprep.subr.bf16.mxu0 0
        %465 = vmatpush1.bf16.msra.mxu0 0
        %466 = vmatprep.subr.bf16.mxu0 0
        %467 = vmatpush1.bf16.msra.mxu0 0
        %468 = vmatprep.subr.bf16.mxu0 0
        %469 = vmatpush1.bf16.msra.mxu0 0
        %470 = vmatprep.subr.bf16.mxu0 0
        %471 = vmatpush1.bf16.msra.mxu0 0
        %472 = vmatprep.subr.bf16.mxu0 0
        %473 = vmatpush1.bf16.msra.mxu0 0
        %474 = vmatprep.subr.bf16.mxu0 0
        %475 = vmatpush1.bf16.msra.mxu0 0
        %476 = vmatprep.subr.bf16.mxu0 0
        %477 = vmatpush1.bf16.msra.mxu0 0
        %478 = vmatprep.subr.bf16.mxu0 0
        %479 = vmatpush1.bf16.msra.mxu0 0
        %480 = vmatprep.subr.bf16.mxu0 0
        %481 = vmatpush1.bf16.msra.mxu0 0
        %482 = vmatprep.subr.bf16.mxu0 0
        %483 = vmatpush1.bf16.msra.mxu0 0
        %484 = vmatprep.subr.bf16.mxu0 0
        %485 = vmatpush1.bf16.msra.mxu0 0
        %486 = vmatprep.subr.bf16.mxu0 0
        %487 = vmatpush1.bf16.msra.mxu0 0
        %488 = vmatprep.subr.bf16.mxu0 0
        %489 = vmatpush1.bf16.msra.mxu0 0
        %490 = vmatprep.subr.bf16.mxu0 0
        %491 = vmatpush1.bf16.msra.mxu0 0
        %492 = vmatprep.mubr.bf16.mxu0 0
        %493 = vmatmul.mubr.bf16.gmra.mrb[0].mxu0 %v271
        %v494 = vpop.f32.mrb[0].mxu0
        %v495 = vadd.f32 %v458, %v494
        %v496 = vpop.f32.mrb[0].mxu0
        %v497 = vpop.f32.mrb[0].mxu0
        %v498 = vpop.f32.mrb[0].mxu0
        %499 = vdwg.mxu0
        %501 = vrot.lane.b32.xlu0 %v495, 32
        %v502 = vpop.permute.xlu0 %501
        %vm504 = vcmask 523520
        %505 = vst.msk [vmem:[%s245] sm:$0xff] %vm504, %v502
        %v506 = vld [vmem:[#allocation2] sm:$0xf]
        %v507 = vld [vmem:[#allocation2 + $0x4] sm:$0xf]
        %v508 = vld [vmem:[#allocation2 + $0x8] sm:$0xf]
        %v509 = vld [vmem:[#allocation2 + $0xc] sm:$0xf]
        %v510 = vld [vmem:[%s2] sm:$0x1]
        %v512 = vlaneseq
        %v513 = vshrl.u32 %v512, 7
        %v514 = vsub.s32 0, %v513
        %v515 = vrot.slane %v510, %v514
        %v520 = vunpack.c.l.b16 %v506
        %v521 = vunpack.c.l.b16 %v507
        %v522 = vunpack.c.l.b16 %v508
        %v523 = vunpack.c.l.b16 %v509
        %v524 = vpack.c.b16 %v521, %v520
        %v525 = vpack.c.b16 %v523, %v522
        %526 = vrot.lane.b32.xlu0 %v524, 64
        %v527 = vpop.permute.xlu0 %526
        %528 = vrot.lane.b32.xlu0 %v525, 64
        %v529 = vpop.permute.xlu0 %528
        %532 = vrot.lane.b32.xlu0 %v515, 64
        %v533 = vpop.permute.xlu0 %532
        %535 = vmatprep.subr.bf16.mxu0 0
        %536 = vmatpush1.bf16.msra.mxu0 %v527
        %537 = vmatprep.subr.bf16.mxu0 0
        %538 = vmatpush1.bf16.msra.mxu0 %v529
        %539 = vmatprep.subr.bf16.mxu0 0
        %540 = vmatpush1.bf16.msra.mxu0 0
        %541 = vmatprep.subr.bf16.mxu0 0
        %542 = vmatpush1.bf16.msra.mxu0 0
        %543 = vmatprep.subr.bf16.mxu0 0
        %544 = vmatpush1.bf16.msra.mxu0 0
        %545 = vmatprep.subr.bf16.mxu0 0
        %546 = vmatpush1.bf16.msra.mxu0 0
        %547 = vmatprep.subr.bf16.mxu0 0
        %548 = vmatpush1.bf16.msra.mxu0 0
        %549 = vmatprep.subr.bf16.mxu0 0
        %550 = vmatpush1.bf16.msra.mxu0 0
        %551 = vmatprep.subr.bf16.mxu0 0
        %552 = vmatpush1.bf16.msra.mxu0 0
        %553 = vmatprep.subr.bf16.mxu0 0
        %554 = vmatpush1.bf16.msra.mxu0 0
        %555 = vmatprep.subr.bf16.mxu0 0
        %556 = vmatpush1.bf16.msra.mxu0 0
        %557 = vmatprep.subr.bf16.mxu0 0
        %558 = vmatpush1.bf16.msra.mxu0 0
        %559 = vmatprep.subr.bf16.mxu0 0
        %560 = vmatpush1.bf16.msra.mxu0 0
        %561 = vmatprep.subr.bf16.mxu0 0
        %562 = vmatpush1.bf16.msra.mxu0 0
        %563 = vmatprep.subr.bf16.mxu0 0
        %564 = vmatpush1.bf16.msra.mxu0 0
        %565 = vmatprep.subr.bf16.mxu0 0
        %566 = vmatpush1.bf16.msra.mxu0 0
        %567 = vmatprep.mubr.bf16.mxu0 0
        %568 = vmatmul.mubr.bf16.gmra.mrb[0].mxu0 %v271
        %v569 = vpop.f32.mrb[0].mxu0
        %v570 = vadd.f32 %v533, %v569
        %v571 = vpop.f32.mrb[0].mxu0
        %v572 = vpop.f32.mrb[0].mxu0
        %v573 = vpop.f32.mrb[0].mxu0
        %574 = vdwg.mxu0
        %576 = vrot.lane.b32.xlu0 %v361, 96
        %v577 = vpop.permute.xlu0 %576
        %v579 = vadd.f32 %v570, %v577
        %581 = vrot.lane.b32.xlu0 %v579, 64
        %v582 = vpop.permute.xlu0 %581
        %vm584 = vcmask 785920
        %585 = vst.msk [vmem:[%s245] sm:$0xff] %vm584, %v582
        %s586 = sand.u32 %s139, 1
        %s587 = scalar_lea.sflag [#allocation4], %s586
        %s588 = sand.u32 %s139, 1
        %s589 = smul.addr %s588, 8
        %s590 = scalar_lea.vmem [#allocation7], %s589
        // Predicated region
        $region49: #{tpu_custom_call.1} parent=39 // pred_check
          %p591 = pneg %p149
        $region50: #{tpu_custom_call.1} parent=39 // pred_check_branch
          %593 = sbr.rel (%p591) target = $region52
        $region51: #{tpu_custom_call.1} parent=39 // pred_region
          %s595 = ssub.s32 128, 128
          %596 = vsyncadd %s587, %s595
          %s597 = smul.addr %s21, 128
          %s598 = scalar_lea.hbm %s5, %s597
          %s600 = sshll.u32 %s590, 4
          %s601 = int_to_ptr.vmem [resolvable:$true] %s600
          %603 = dma.vmem_to_hbm [thread:$0]  %s601, 128, %s598, %s587
        $region52: #{tpu_custom_call.1} parent=39 // pred_fallthru
          _
      $region40: #{tpu_custom_call.1} parent=5 // pred_fallthru
        _
      %p604 = scmp.le.s32.totalorder 2, %s16
      // Predicated region
      $region53: #{tpu_custom_call.1} parent=5 // pred_check
        %p605 = pneg %p604
      $region54: #{tpu_custom_call.1} parent=5 // pred_check_branch
        %607 = sbr.rel (%p605) target = $region56
      $region55: #{tpu_custom_call.1} parent=5 // pred_region
        %s608 = ssub.s32 %s16, 2
        // Predicated region
        $region57: #{tpu_custom_call.1} parent=55 // pred_check
          %p609 = pneg %p155
        $region58: #{tpu_custom_call.1} parent=55 // pred_check_branch
          %611 = sbr.rel (%p609) target = $region60
        $region59: #{tpu_custom_call.1} parent=55 // pred_region
          %s612 = sand.u32 %s140, 1
          %s613 = scalar_lea.sflag [#allocation4], %s612
          %s614 = sand.u32 %s140, 1
          %s615 = smul.addr %s614, 8
          %s616 = scalar_lea.vmem [#allocation7], %s615
          %617 = dma.done %s613, 128
        $region60: #{tpu_custom_call.1} parent=55 // pred_fallthru
          _
      $region56: #{tpu_custom_call.1} parent=5 // pred_fallthru
        _
    $region6: #{tpu_custom_call.1} parent=1 // loop_footer
      %s20 = sadd.s32 1, %s16
    $region7: #{tpu_custom_call.1} parent=1 // loop_footer_branch
      %15 = sbr.rel target = $region3
    $region8: #{tpu_custom_call.1} parent=1 // loop_exit
      _
    %618 = vsyncpa [#allocation3], 1
    %s619 = scalar_lea.sflag [#allocation3], 1
    %620 = vsyncpa %s619, 1
    %621 = vsyncpa [#allocation6], 1
    %622 = vsyncpa [#allocation4], 1
    %s623 = scalar_lea.sflag [#allocation4], 1
    %624 = vsyncpa %s623, 1

</llo_original>
